<compile_context>
chip_gen: v5e
topology: v5e:2x2
jax: 0.10.0
libtpu: 0.0.40
codegen_flags: <defaults>
</compile_context>

<pallas_src>
import functools
import math

import jax
import jax.numpy as jnp
from jax.experimental import pallas as pl
from jax.experimental.pallas import tpu as pltpu


def garo_kernel(x_ref, wq_ref, bq_ref, wkt_ref, bk_ref,
                pooled_ref, att_ref, *, inv_sqrt_d, inv_n):
    x = x_ref[...]                                                 # (BB, N, H) bf16

    # mean over node axis in f32 (VPU), back to bf16 for the MXU
    x_mean = jnp.mean(x.astype(jnp.float32), axis=1)               # (BB, H) f32

    # query embedding: (BB, H) @ (H, D), bf16 operands, f32 accumulate
    x_q = (jnp.dot(x_mean.astype(jnp.bfloat16), wq_ref[...],
                   preferred_element_type=jnp.float32)
           + bq_ref[...])                                          # (BB, D) f32

    # fold the key projection into the query: q_proj = x_q @ Wk^T (BB, H)
    q_proj = jnp.dot(x_q.astype(jnp.bfloat16), wkt_ref[...],
                     preferred_element_type=jnp.float32)           # (BB, H) f32
    # constant key-bias contribution per batch: x_q . bk            (BB, 1)
    key_bias = jnp.sum(x_q * bk_ref[...], axis=-1, keepdims=True)

    # attention scores: batched contraction over H (no x_k tensor needed)
    scores = jnp.einsum("bqh,bnh->bqn",
                        q_proj[:, None, :].astype(x.dtype), x,
                        preferred_element_type=jnp.float32)        # (BB, 1, N)
    scores = (scores + key_bias[:, None, :]) * inv_sqrt_d
    att = jax.nn.sigmoid(scores)                                   # (BB, 1, N) f32

    # attention-weighted node mean: (BB,1,N) @ (BB,N,H) -> (BB,1,H), divided by N
    pooled = jnp.einsum("bqn,bnh->bqh", att.astype(x.dtype), x,
                        preferred_element_type=jnp.float32) * inv_n

    pooled_ref[...] = pooled[:, 0, :].astype(pooled_ref.dtype)     # (BB, H) dense slab
    att_ref[...] = att[:, 0, :].astype(att_ref.dtype)              # (BB, N) dense slab


def module_garo_forward(x, wq, bq, wk, bk, batch_size, *, block_b=None):
    """x: any shape reshapeable to (batch_size, N, H).

    Returns (pooled (B, H) f32, graph attention (B, 1, N) f32), matching the
    PyTorch forward in eval mode.
    """
    H = x.shape[-1]
    x3 = x.reshape(batch_size, -1, H)
    B, N, _ = x3.shape
    D = wq.shape[1]

    if block_b is None:
        # Budget: double-buffered bf16 x block + one transient f32 copy of it,
        # kept under ~12 MiB (safe against v5e/v6e scoped defaults & v7x 64 MiB VMEM).
        per_batch = N * H * (2 * 2 + 4)
        block_b = max(1, (12 * 1024 * 1024) // max(per_batch, 1))
    if block_b >= B:
        bb = B                                      # single full-batch block
    else:
        bb = max(8, (int(block_b) // 8) * 8)        # sublane-aligned partial blocks

    # Pad the batch so B is a multiple of the block (ragged tail handled here).
    B_pad = pl.cdiv(B, bb) * bb
    if B_pad != B:
        x3 = jnp.pad(x3, ((0, B_pad - B), (0, 0), (0, 0)))

    # bf16 MXU operands; biases / accumulation / sigmoid stay in f32.
    x_bf = x3.astype(jnp.bfloat16)
    wq_bf = jnp.asarray(wq, jnp.bfloat16)
    wkt_bf = jnp.asarray(wk, jnp.bfloat16).T        # (D, H): key proj folded into query
    bq2 = bq.reshape(1, D).astype(jnp.float32)
    bk2 = bk.reshape(1, D).astype(jnp.float32)

    kernel = functools.partial(
        garo_kernel,
        inv_sqrt_d=float(1.0 / math.sqrt(D)),       # compile-time literals
        inv_n=float(1.0 / N),
    )

    pooled, att = pl.pallas_call(
        kernel,
        out_shape=(
            jax.ShapeDtypeStruct((B_pad, H), jnp.float32),
            jax.ShapeDtypeStruct((B_pad, N), jnp.float32),
        ),
        grid_spec=pltpu.PrefetchScalarGridSpec(
            num_scalar_prefetch=0,
            grid=(B_pad // bb,),
            in_specs=[
                pl.BlockSpec((bb, N, H), lambda b: (b, 0, 0)),   # x: BB batches / step
                pl.BlockSpec((H, D), lambda b: (0, 0)),          # Wq (resident)
                pl.BlockSpec((1, D), lambda b: (0, 0)),          # bq
                pl.BlockSpec((D, H), lambda b: (0, 0)),          # Wk^T (resident)
                pl.BlockSpec((1, D), lambda b: (0, 0)),          # bk
            ],
            out_specs=[
                pl.BlockSpec((bb, H), lambda b: (b, 0)),         # pooled, lane-dense
                pl.BlockSpec((bb, N), lambda b: (b, 0)),         # graph attention
            ],
        ),
        compiler_params=pltpu.CompilerParams(
            dimension_semantics=("parallel",),        # batch axis shards across TCs (v7x)
            vmem_limit_bytes=48 * 1024 * 1024,        # above v5e/v6e scoped default, below v7x physical
        ),
    )(x_bf, wq_bf, bq2, wkt_bf, bk2)

    pooled = pooled[:B]
    att = att[:B][:, None, :]                         # (B, 1, N), as the torch module returns
    return pooled, att


def reference_forward(x, wq, bq, wk, bk, batch_size):
    """Pure-JAX f32 reference matching the PyTorch forward (eval mode)."""
    H = x.shape[-1]
    x3 = x.reshape(batch_size, -1, H).astype(jnp.float32)
    D = wq.shape[1]
    x_q = jnp.mean(x3, axis=-2) @ wq + bq                        # (B, D)
    x_k = x3 @ wk + bk                                           # (B, N, D)
    scores = jnp.einsum("bd,bnd->bn", x_q, x_k) / jnp.sqrt(jnp.float32(D))
    att = jax.nn.sigmoid(scores)[:, None, :]                     # (B, 1, N)
    pooled = jnp.mean(x3 * jnp.swapaxes(att, 1, 2), axis=-2)     # (B, H)
    return pooled, att


if __name__ == "__main__":
    # Small deterministic example: batch=20, nodes=8, hidden=32, upscale=1.0 -> D=32.
    # block_b=8 exercises a multi-step grid + ragged-tail padding (B_pad=24).
    B, N, H = 20, 8, 32
    D = H  # round(1.0 * hidden_dim)

    key = jax.random.PRNGKey(0)
    kx, kwq, kbq, kwk, kbk = jax.random.split(key, 5)

    x = jax.random.normal(kx, (B, N, H), dtype=jnp.float32)

    # nn.Linear-style uniform init: U(-1/sqrt(H), 1/sqrt(H)); weights stored as (H, D)
    bound = 1.0 / math.sqrt(H)
    wq = jax.random.uniform(kwq, (H, D), jnp.float32, -bound, bound)
    bq = jax.random.uniform(kbq, (D,), jnp.float32, -bound, bound)
    wk = jax.random.uniform(kwk, (H, D), jnp.float32, -bound, bound)
    bk = jax.random.uniform(kbk, (D,), jnp.float32, -bound, bound)

    pooled, att = module_garo_forward(x, wq, bq, wk, bk, batch_size=B, block_b=8)
    pooled = jax.block_until_ready(pooled)
    att = jax.block_until_ready(att)

    pooled_ref, att_ref = reference_forward(x, wq, bq, wk, bk, batch_size=B)
    assert pooled.shape == (B, H) and att.shape == (B, 1, N)
    # bf16 MXU operands -> loosen tolerance vs. the pure-f32 reference.
    assert jnp.allclose(att, att_ref, atol=2e-2, rtol=2e-2), \
        float(jnp.max(jnp.abs(att - att_ref)))
    assert jnp.allclose(pooled, pooled_ref, atol=2e-2, rtol=2e-2), \
        float(jnp.max(jnp.abs(pooled - pooled_ref)))

    print("KERNEL_OK")
</pallas_src>

<mosaic_0001>
module attributes {stable_mosaic.version = 11 : i64} {
  func.func @garo_kernel(%arg0: i32, %arg1: memref<8x8x32xbf16, #tpu.memory_space<vmem>>, %arg2: memref<32x32xbf16, #tpu.memory_space<vmem>>, %arg3: memref<1x32xf32, #tpu.memory_space<vmem>>, %arg4: memref<32x32xbf16, #tpu.memory_space<vmem>>, %arg5: memref<1x32xf32, #tpu.memory_space<vmem>>, %arg6: memref<8x32xf32, #tpu.memory_space<vmem>>, %arg7: memref<8x8xf32, #tpu.memory_space<vmem>>) attributes {dimension_semantics = [#tpu.dimension_semantics<parallel>], iteration_bounds = array<i64: 3>, scalar_prefetch = 0 : i64, scratch_operands = 0 : i64, tpu.core_type = #tpu.core_type<tc>, window_params = [{transform_indices = @transform_0, window_bounds = array<i64: 8, 8, 32>}, {pipeline_mode = #tpu.pipeline_mode<synchronous>, transform_indices = @transform_1, window_bounds = array<i64: 32, 32>}, {pipeline_mode = #tpu.pipeline_mode<synchronous>, transform_indices = @transform_2, window_bounds = array<i64: 1, 32>}, {pipeline_mode = #tpu.pipeline_mode<synchronous>, transform_indices = @transform_3, window_bounds = array<i64: 32, 32>}, {pipeline_mode = #tpu.pipeline_mode<synchronous>, transform_indices = @transform_4, window_bounds = array<i64: 1, 32>}, {transform_indices = @transform_5, window_bounds = array<i64: 8, 32>}, {transform_indices = @transform_6, window_bounds = array<i64: 8, 8>}]} {
    %c0 = arith.constant 0 : index
    %c0_0 = arith.constant 0 : index
    %c0_1 = arith.constant 0 : index
    %0 = vector.load %arg1[%c0, %c0_0, %c0_1] : memref<8x8x32xbf16, #tpu.memory_space<vmem>>, vector<8x8x32xbf16>
    %1 = arith.extf %0 : vector<8x8x32xbf16> to vector<8x8x32xf32>
    %cst = arith.constant dense<0.000000e+00> : vector<8x32xf32>
    %2 = vector.multi_reduction <add>, %1, %cst [1] : vector<8x8x32xf32> to vector<8x32xf32>
    %cst_2 = arith.constant 8.000000e+00 : f32
    %3 = vector.broadcast %cst_2 : f32 to vector<8x32xf32>
    %4 = arith.divf %2, %3 : vector<8x32xf32>
    %5 = arith.truncf %4 : vector<8x32xf32> to vector<8x32xbf16>
    %c0_3 = arith.constant 0 : index
    %c0_4 = arith.constant 0 : index
    %6 = vector.load %arg2[%c0_3, %c0_4] : memref<32x32xbf16, #tpu.memory_space<vmem>>, vector<32x32xbf16>
    %cst_5 = arith.constant dense<0.000000e+00> : vector<8x32xf32>
    %7 = tpu.matmul %5, %6, %cst_5 {dimension_numbers = #tpu.dot_dimension_numbers<[1], [0], [0], [1], [0, 0, 1, 1], [], []>} : vector<8x32xbf16>, vector<32x32xbf16>, vector<8x32xf32> -> vector<8x32xf32>
    %c0_6 = arith.constant 0 : index
    %c0_7 = arith.constant 0 : index
    %8 = vector.load %arg3[%c0_6, %c0_7] : memref<1x32xf32, #tpu.memory_space<vmem>>, vector<1x32xf32>
    %9 = vector.broadcast %8 : vector<1x32xf32> to vector<8x32xf32>
    %10 = arith.addf %7, %9 : vector<8x32xf32>
    %11 = arith.truncf %10 : vector<8x32xf32> to vector<8x32xbf16>
    %c0_8 = arith.constant 0 : index
    %c0_9 = arith.constant 0 : index
    %12 = vector.load %arg4[%c0_8, %c0_9] : memref<32x32xbf16, #tpu.memory_space<vmem>>, vector<32x32xbf16>
    %cst_10 = arith.constant dense<0.000000e+00> : vector<8x32xf32>
    %13 = tpu.matmul %11, %12, %cst_10 {dimension_numbers = #tpu.dot_dimension_numbers<[1], [0], [0], [1], [0, 0, 1, 1], [], []>} : vector<8x32xbf16>, vector<32x32xbf16>, vector<8x32xf32> -> vector<8x32xf32>
    %c0_11 = arith.constant 0 : index
    %c0_12 = arith.constant 0 : index
    %14 = vector.load %arg5[%c0_11, %c0_12] : memref<1x32xf32, #tpu.memory_space<vmem>>, vector<1x32xf32>
    %15 = vector.broadcast %14 : vector<1x32xf32> to vector<8x32xf32>
    %16 = arith.mulf %10, %15 : vector<8x32xf32>
    %cst_13 = arith.constant dense<0.000000e+00> : vector<8xf32>
    %17 = vector.multi_reduction <add>, %16, %cst_13 [1] : vector<8x32xf32> to vector<8xf32>
    %18 = vector.shape_cast %17 : vector<8xf32> to vector<8x1xf32>
    %19 = vector.shape_cast %13 : vector<8x32xf32> to vector<8x1x32xf32>
    %20 = arith.truncf %19 : vector<8x1x32xf32> to vector<8x1x32xbf16>
    "tpu.trace_start"() <{level = 10 : i32, message = "bqh,bnh->bqn"}> : () -> ()
    %cst_14 = arith.constant dense<0.000000e+00> : vector<8x1x8xf32>
    %21 = tpu.matmul %20, %0, %cst_14 {dimension_numbers = #tpu.dot_dimension_numbers<[2], [2], [1], [1], [0, 0, 0, 1, 1, 1], [0], [0]>} : vector<8x1x32xbf16>, vector<8x8x32xbf16>, vector<8x1x8xf32> -> vector<8x1x8xf32>
    "tpu.trace_stop"() : () -> ()
    %22 = vector.shape_cast %18 : vector<8x1xf32> to vector<8x1x1xf32>
    %23 = vector.broadcast %22 : vector<8x1x1xf32> to vector<8x1x8xf32>
    %24 = arith.addf %21, %23 : vector<8x1x8xf32>
    %cst_15 = arith.constant 0.176776692 : f32
    %25 = vector.broadcast %cst_15 : f32 to vector<8x1x8xf32>
    %26 = arith.mulf %24, %25 : vector<8x1x8xf32>
    %27 = arith.negf %26 : vector<8x1x8xf32>
    %28 = math.exp %27 : vector<8x1x8xf32>
    %cst_16 = arith.constant 1.000000e+00 : f32
    %29 = vector.broadcast %cst_16 : f32 to vector<8x1x8xf32>
    %30 = arith.addf %29, %28 : vector<8x1x8xf32>
    %31 = arith.divf %29, %30 : vector<8x1x8xf32>
    %32 = arith.truncf %31 : vector<8x1x8xf32> to vector<8x1x8xbf16>
    "tpu.trace_start"() <{level = 10 : i32, message = "bqn,bnh->bqh"}> : () -> ()
    %cst_17 = arith.constant dense<0.000000e+00> : vector<8x1x32xf32>
    %33 = tpu.matmul %32, %0, %cst_17 {dimension_numbers = #tpu.dot_dimension_numbers<[2], [1], [1], [2], [0, 0, 0, 1, 1, 2], [0], [0]>} : vector<8x1x8xbf16>, vector<8x8x32xbf16>, vector<8x1x32xf32> -> vector<8x1x32xf32>
    "tpu.trace_stop"() : () -> ()
    %cst_18 = arith.constant 1.250000e-01 : f32
    %34 = vector.broadcast %cst_18 : f32 to vector<8x1x32xf32>
    %35 = arith.mulf %33, %34 : vector<8x1x32xf32>
    %36 = vector.shape_cast %35 : vector<8x1x32xf32> to vector<8x32xf32>
    %c0_19 = arith.constant 0 : index
    %c0_20 = arith.constant 0 : index
    %37 = vector.load %arg6[%c0_19, %c0_20] : memref<8x32xf32, #tpu.memory_space<vmem>>, vector<8x32xf32>
    tpu.vector_store %arg6[%c0_19, %c0_20], %36 {strides = array<i32>} : memref<8x32xf32, #tpu.memory_space<vmem>>, vector<8x32xf32>,
    %38 = vector.shape_cast %31 : vector<8x1x8xf32> to vector<8x8xf32>
    %c0_21 = arith.constant 0 : index
    %c0_22 = arith.constant 0 : index
    %39 = vector.load %arg7[%c0_21, %c0_22] : memref<8x8xf32, #tpu.memory_space<vmem>>, vector<8x8xf32>
    tpu.vector_store %arg7[%c0_21, %c0_22], %38 {strides = array<i32>} : memref<8x8xf32, #tpu.memory_space<vmem>>, vector<8x8xf32>,
    return
  }
  func.func @transform_0(%arg0: i32) -> (i32, i32, i32) {
    %c0_i32 = arith.constant 0 : i32
    %c0_i32_0 = arith.constant 0 : i32
    %c0_i32_1 = arith.constant 0 : i32
    return %arg0, %c0_i32, %c0_i32_0 : i32, i32, i32
  }
  func.func @transform_1(%arg0: i32) -> (i32, i32) {
    %c0_i32 = arith.constant 0 : i32
    %c0_i32_0 = arith.constant 0 : i32
    %c0_i32_1 = arith.constant 0 : i32
    return %c0_i32, %c0_i32_0 : i32, i32
  }
  func.func @transform_2(%arg0: i32) -> (i32, i32) {
    %c0_i32 = arith.constant 0 : i32
    %c0_i32_0 = arith.constant 0 : i32
    %c0_i32_1 = arith.constant 0 : i32
    return %c0_i32, %c0_i32_0 : i32, i32
  }
  func.func @transform_3(%arg0: i32) -> (i32, i32) {
    %c0_i32 = arith.constant 0 : i32
    %c0_i32_0 = arith.constant 0 : i32
    %c0_i32_1 = arith.constant 0 : i32
    return %c0_i32, %c0_i32_0 : i32, i32
  }
  func.func @transform_4(%arg0: i32) -> (i32, i32) {
    %c0_i32 = arith.constant 0 : i32
    %c0_i32_0 = arith.constant 0 : i32
    %c0_i32_1 = arith.constant 0 : i32
    return %c0_i32, %c0_i32_0 : i32, i32
  }
  func.func @transform_5(%arg0: i32) -> (i32, i32) {
    %c0_i32 = arith.constant 0 : i32
    %c0_i32_0 = arith.constant 0 : i32
    return %arg0, %c0_i32 : i32, i32
  }
  func.func @transform_6(%arg0: i32) -> (i32, i32) {
    %c0_i32 = arith.constant 0 : i32
    %c0_i32_0 = arith.constant 0 : i32
    return %arg0, %c0_i32 : i32, i32
  }
}

</mosaic_0001>

<llo_original>
// kernel: tpu_custom_call.1
$region0: #{tpu_custom_call.1}
  #allocation0 [shape = 'u32[]', space=smem, size = 0x4, offset = 0x4, fixed_abs, tag = 'smem constant byte address 0x4 - core index']
  #allocation1 [shape = 'u32[72,128]{1,0:T(1,128)}', space=vmem, size = 0x9000, scoped, tag = 'internal scratch']
  %s0 = inlined_call_operand.hbm [shape: bf16[24,8,32], index: 0, kind: input, shape index: {}]
  %s1 = inlined_call_operand.hbm [shape: bf16[32,32], index: 1, kind: input, shape index: {}]
  %s2 = inlined_call_operand.vmem [shape: f32[1,32], index: 2, kind: input, shape index: {}]
  %s3 = inlined_call_operand.hbm [shape: bf16[32,32], index: 3, kind: input, shape index: {}]
  %s4 = inlined_call_operand.vmem [shape: f32[1,32], index: 4, kind: input, shape index: {}]
  %s5 = inlined_call_operand.hbm [shape: f32[24,32], index: 5, kind: output, shape index: {0}]
  %s6 = inlined_call_operand.vmem [shape: f32[24,8], index: 6, kind: output, shape index: {1}]
  %7 = xla_tuple %s5, %s6
  %s8 = sld [smem:[#allocation0]]
  $region73: #{tpu_custom_call.1} parent=0
    _
  %s10 = ssub.s32 1, %s8
  %s11 = scalar_select 0, %s10, %s8
  $region1: #{tpu_custom_call.1} parent=0
    #allocation2 [shape = 'u8[32768]{0}', space=vmem, size = 0x8000, scoped, tag = 'input window, operand 0']
    #allocation3 [shape = 's32[2]{0}', space=sflag, size = 0x8, scoped, tag = 'scoped memory for tpu_custom_call.1']
    #allocation4 [shape = 's32[2]{0}', space=sflag, size = 0x8, scoped, tag = 'scoped memory for tpu_custom_call.1']
    #allocation5 [shape = 'u8[8192]{0}', space=vmem, size = 0x2000, scoped, tag = 'input window, operand 1, single buffered']
    #allocation6 [shape = 's32[1]{0}', space=sflag, size = 0x4, scoped, tag = 'scoped memory for tpu_custom_call.1']
    #allocation7 [shape = 'u8[8192]{0}', space=vmem, size = 0x2000, scoped, tag = 'input window, operand 3, single buffered']
    #allocation8 [shape = 'u8[8192]{0}', space=vmem, size = 0x2000, scoped, tag = 'output window, operand 0']
    %12 = vsyncpa [#allocation3], 0
    %s13 = scalar_lea.sflag [#allocation3], 1
    %14 = vsyncpa %s13, 0
    %15 = vsyncpa [#allocation6], 0
    %16 = vsyncpa [#allocation4], 0
    %s17 = scalar_lea.sflag [#allocation4], 1
    %18 = vsyncpa %s17, 0
    loop: start=0, step=1, limit=5
    $region2: #{tpu_custom_call.1} parent=1 // loop_pre_header
      _
    $region3: #{tpu_custom_call.1} parent=1 // loop_header
      %s20 = sphi 0, %s24
      %p21 = scmp.ge.s32.totalorder %s20, 5
      %s30 = sphi 0, %s32
      %s33 = sphi 0, %s30
      %s34 = sphi 0, %s33
      %s50 = sphi 0, %s34
      %s54 = sphi 0, %s54
      %s56 = sphi 0, %s54
      %s57 = sphi 0, %s56
      %s71 = sphi 0, %s57
      %s75 = sphi 0, %s75
      %s77 = sphi 0, %s75
      %s78 = sphi 0, %s77
      %s92 = sphi 0, %s78
      %s96 = sphi 0, %s96
      %s98 = sphi 0, %s96
      %s99 = sphi 0, %s98
      %s113 = sphi 0, %s99
      %s117 = sphi 0, %s117
      %s119 = sphi 0, %s117
      %s120 = sphi 0, %s119
      %s134 = sphi 0, %s120
      %s140 = sphi 0, %s142
      %s143 = sphi 0, %s140
      %s144 = sphi 0, %s143
      %s160 = sphi 0, %s144
      %s166 = sphi 0, %s168
      %s169 = sphi 0, %s166
      %s170 = sphi 0, %s169
      %s186 = sphi 0, %s170
    $region4: #{tpu_custom_call.1} parent=1 // loop_header_branch
      %23 = sbr.rel (%p21) target = $region8
    $region5: #{tpu_custom_call.1} parent=1 // loop_body
      %s25 = ssub.s32 %s20, 1
      %s26 = ssub.s32 %s20, 2
      %s27 = sadd.s32 %s20, 1
      %s28 = ssub.s32 %s20, %s27
      %p29 = scmp.eq.s32.totalorder %s28, 0
      %s31 = sadd.s32 %s30, 1
      %s32 = scalar_select %p29, %s30, %s31
      %p35 = pneg %p29
      %p36 = scmp.eq.s32.totalorder %s20, 2
      %p37 = por %p35, %p36
      %p38 = scmp.ne.s32.totalorder %s30, %s33
      %p39 = scmp.eq.s32.totalorder %s20, 0
      %p40 = por %p38, %p39
      %p41 = scmp.ne.s32.totalorder %s30, %s33
      %p42 = scmp.eq.s32.totalorder %s25, 2
      %p43 = por %p41, %p42
      %p44 = scmp.ne.s32.totalorder %s33, %s34
      %p45 = scmp.eq.s32.totalorder %s25, 0
      %p46 = por %p44, %p45
      %p47 = scmp.ne.s32.totalorder %s33, %s34
      %p48 = scmp.eq.s32.totalorder %s26, 2
      %p49 = por %p47, %p48
      %p51 = scmp.ne.s32.totalorder %s34, %s50
      %p52 = scmp.eq.s32.totalorder %s26, 0
      %p53 = por %p51, %p52
      %s55 = sadd.s32 %s54, 1
      %p58 = scmp.eq.s32.totalorder %s20, 2
      %p59 = scmp.ne.s32.totalorder %s54, %s56
      %p60 = scmp.eq.s32.totalorder %s20, 0
      %p61 = por %p59, %p60
      %p62 = scmp.ne.s32.totalorder %s54, %s56
      %p63 = scmp.eq.s32.totalorder %s25, 2
      %p64 = por %p62, %p63
      %p65 = scmp.ne.s32.totalorder %s56, %s57
      %p66 = scmp.eq.s32.totalorder %s25, 0
      %p67 = por %p65, %p66
      %p68 = scmp.ne.s32.totalorder %s56, %s57
      %p69 = scmp.eq.s32.totalorder %s26, 2
      %p70 = por %p68, %p69
      %p72 = scmp.ne.s32.totalorder %s57, %s71
      %p73 = scmp.eq.s32.totalorder %s26, 0
      %p74 = por %p72, %p73
      %s76 = sadd.s32 %s75, 1
      %p79 = scmp.eq.s32.totalorder %s20, 2
      %p80 = scmp.ne.s32.totalorder %s75, %s77
      %p81 = scmp.eq.s32.totalorder %s20, 0
      %p82 = por %p80, %p81
      %p83 = scmp.ne.s32.totalorder %s75, %s77
      %p84 = scmp.eq.s32.totalorder %s25, 2
      %p85 = por %p83, %p84
      %p86 = scmp.ne.s32.totalorder %s77, %s78
      %p87 = scmp.eq.s32.totalorder %s25, 0
      %p88 = por %p86, %p87
      %p89 = scmp.ne.s32.totalorder %s77, %s78
      %p90 = scmp.eq.s32.totalorder %s26, 2
      %p91 = por %p89, %p90
      %p93 = scmp.ne.s32.totalorder %s78, %s92
      %p94 = scmp.eq.s32.totalorder %s26, 0
      %p95 = por %p93, %p94
      %s97 = sadd.s32 %s96, 1
      %p100 = scmp.eq.s32.totalorder %s20, 2
      %p101 = scmp.ne.s32.totalorder %s96, %s98
      %p102 = scmp.eq.s32.totalorder %s20, 0
      %p103 = por %p101, %p102
      %p104 = scmp.ne.s32.totalorder %s96, %s98
      %p105 = scmp.eq.s32.totalorder %s25, 2
      %p106 = por %p104, %p105
      %p107 = scmp.ne.s32.totalorder %s98, %s99
      %p108 = scmp.eq.s32.totalorder %s25, 0
      %p109 = por %p107, %p108
      %p110 = scmp.ne.s32.totalorder %s98, %s99
      %p111 = scmp.eq.s32.totalorder %s26, 2
      %p112 = por %p110, %p111
      %p114 = scmp.ne.s32.totalorder %s99, %s113
      %p115 = scmp.eq.s32.totalorder %s26, 0
      %p116 = por %p114, %p115
      %s118 = sadd.s32 %s117, 1
      %p121 = scmp.eq.s32.totalorder %s20, 2
      %p122 = scmp.ne.s32.totalorder %s117, %s119
      %p123 = scmp.eq.s32.totalorder %s20, 0
      %p124 = por %p122, %p123
      %p125 = scmp.ne.s32.totalorder %s117, %s119
      %p126 = scmp.eq.s32.totalorder %s25, 2
      %p127 = por %p125, %p126
      %p128 = scmp.ne.s32.totalorder %s119, %s120
      %p129 = scmp.eq.s32.totalorder %s25, 0
      %p130 = por %p128, %p129
      %p131 = scmp.ne.s32.totalorder %s119, %s120
      %p132 = scmp.eq.s32.totalorder %s26, 2
      %p133 = por %p131, %p132
      %p135 = scmp.ne.s32.totalorder %s120, %s134
      %p136 = scmp.eq.s32.totalorder %s26, 0
      %p137 = por %p135, %p136
      %s138 = ssub.s32 %s20, %s27
      %p139 = scmp.eq.s32.totalorder %s138, 0
      %s141 = sadd.s32 %s140, 1
      %s142 = scalar_select %p139, %s140, %s141
      %p145 = pneg %p139
      %p146 = scmp.eq.s32.totalorder %s20, 2
      %p147 = por %p145, %p146
      %p148 = scmp.ne.s32.totalorder %s140, %s143
      %p149 = scmp.eq.s32.totalorder %s20, 0
      %p150 = por %p148, %p149
      %p151 = scmp.ne.s32.totalorder %s140, %s143
      %p152 = scmp.eq.s32.totalorder %s25, 2
      %p153 = por %p151, %p152
      %p154 = scmp.ne.s32.totalorder %s143, %s144
      %p155 = scmp.eq.s32.totalorder %s25, 0
      %p156 = por %p154, %p155
      %p157 = scmp.ne.s32.totalorder %s143, %s144
      %p158 = scmp.eq.s32.totalorder %s26, 2
      %p159 = por %p157, %p158
      %p161 = scmp.ne.s32.totalorder %s144, %s160
      %p162 = scmp.eq.s32.totalorder %s26, 0
      %p163 = por %p161, %p162
      %s164 = ssub.s32 %s20, %s27
      %p165 = scmp.eq.s32.totalorder %s164, 0
      %s167 = sadd.s32 %s166, 1
      %s168 = scalar_select %p165, %s166, %s167
      %p171 = pneg %p165
      %p172 = scmp.eq.s32.totalorder %s20, 2
      %p173 = por %p171, %p172
      %p174 = scmp.ne.s32.totalorder %s166, %s169
      %p175 = scmp.eq.s32.totalorder %s20, 0
      %p176 = por %p174, %p175
      %p177 = scmp.ne.s32.totalorder %s166, %s169
      %p178 = scmp.eq.s32.totalorder %s25, 2
      %p179 = por %p177, %p178
      %p180 = scmp.ne.s32.totalorder %s169, %s170
      %p181 = scmp.eq.s32.totalorder %s25, 0
      %p182 = por %p180, %p181
      %p183 = scmp.ne.s32.totalorder %s169, %s170
      %p184 = scmp.eq.s32.totalorder %s26, 2
      %p185 = por %p183, %p184
      %p187 = scmp.ne.s32.totalorder %s170, %s186
      %p188 = scmp.eq.s32.totalorder %s26, 0
      %p189 = por %p187, %p188
      %p190 = scmp.le.s32.totalorder 1, %s20
      %p191 = scmp.lt.s32.totalorder %s20, 4
      %p192 = pnand %p190, %p191
      %p193 = pneg %p192
      // Predicated region
      $region9: #{tpu_custom_call.1} parent=5 // pred_check
        _
      $region10: #{tpu_custom_call.1} parent=5 // pred_check_branch
        %195 = sbr.rel (%p192) target = $region12
      $region11: #{tpu_custom_call.1} parent=5 // pred_region
        %s196 = ssub.s32 %s20, 1
        // Predicated region
        $region13: #{tpu_custom_call.1} parent=11 // pred_check
          %p197 = pneg %p67
        $region14: #{tpu_custom_call.1} parent=11 // pred_check_branch
          %199 = sbr.rel (%p197) target = $region16
        $region15: #{tpu_custom_call.1} parent=11 // pred_region
          %201 = vsyncadd [#allocation6], 0
          %s202 = sshll.u32 %s1, 4
          %s203 = int_to_ptr.hbm [resolvable:$true] %s202
          %s204 = sshll.u32 [#allocation5], 4
          %s205 = int_to_ptr.vmem [resolvable:$true] %s204
          %210 = dma.hbm_to_vmem [thread:$0]  %s203, 256, %s205, [#allocation6], 64, 64, 4
        $region16: #{tpu_custom_call.1} parent=11 // pred_fallthru
          _
        // Predicated region
        $region17: #{tpu_custom_call.1} parent=11 // pred_check
          %p211 = pneg %p88
        $region18: #{tpu_custom_call.1} parent=11 // pred_check_branch
          %213 = sbr.rel (%p211) target = $region20
        $region19: #{tpu_custom_call.1} parent=11 // pred_region
          _
        $region20: #{tpu_custom_call.1} parent=11 // pred_fallthru
          _
        // Predicated region
        $region21: #{tpu_custom_call.1} parent=11 // pred_check
          %p214 = pneg %p109
        $region22: #{tpu_custom_call.1} parent=11 // pred_check_branch
          %216 = sbr.rel (%p214) target = $region24
        $region23: #{tpu_custom_call.1} parent=11 // pred_region
          %218 = vsyncadd [#allocation6], 0
          %s219 = sshll.u32 %s3, 4
          %s220 = int_to_ptr.hbm [resolvable:$true] %s219
          %s221 = sshll.u32 [#allocation7], 4
          %s222 = int_to_ptr.vmem [resolvable:$true] %s221
          %227 = dma.hbm_to_vmem [thread:$0]  %s220, 256, %s222, [#allocation6], 64, 64, 4
        $region24: #{tpu_custom_call.1} parent=11 // pred_fallthru
          _
        // Predicated region
        $region25: #{tpu_custom_call.1} parent=11 // pred_check
          %p228 = pneg %p130
        $region26: #{tpu_custom_call.1} parent=11 // pred_check_branch
          %230 = sbr.rel (%p228) target = $region28
        $region27: #{tpu_custom_call.1} parent=11 // pred_region
          _
        $region28: #{tpu_custom_call.1} parent=11 // pred_fallthru
          _
      $region12: #{tpu_custom_call.1} parent=5 // pred_fallthru
        _
      %p231 = scmp.lt.s32.totalorder %s20, 3
      // Predicated region
      $region29: #{tpu_custom_call.1} parent=5 // pred_check
        %p232 = pneg %p231
      $region30: #{tpu_custom_call.1} parent=5 // pred_check_branch
        %234 = sbr.rel (%p232) target = $region32
      $region31: #{tpu_custom_call.1} parent=5 // pred_region
        // Predicated region
        $region33: #{tpu_custom_call.1} parent=31 // pred_check
          %p235 = pneg %p40
        $region34: #{tpu_custom_call.1} parent=31 // pred_check_branch
          %237 = sbr.rel (%p235) target = $region36
        $region35: #{tpu_custom_call.1} parent=31 // pred_region
          %s238 = sand.u32 %s30, 1
          %s239 = scalar_lea.sflag [#allocation3], %s238
          %s240 = sand.u32 %s30, 1
          %s241 = smul.addr %s240, 32
          %s242 = scalar_lea.vmem [#allocation2], %s241
          %s243 = smul.u32 8, %s20
          %245 = vsyncadd %s239, 0
          %s246 = smul.addr %s243, 4
          %s247 = scalar_lea.hbm %s0, %s246
          %s248 = sshll.u32 %s247, 4
          %s249 = int_to_ptr.hbm [resolvable:$true] %s248
          %s250 = sshll.u32 %s242, 4
          %s251 = int_to_ptr.vmem [resolvable:$true] %s250
          %256 = dma.hbm_to_vmem [thread:$0]  %s249, 512, %s251, %s239, 64, 64, 4
        $region36: #{tpu_custom_call.1} parent=31 // pred_fallthru
          _
      $region32: #{tpu_custom_call.1} parent=5 // pred_fallthru
        _
      %p257 = scmp.le.s32.totalorder 1, %s20
      %p258 = scmp.lt.s32.totalorder %s20, 4
      %p259 = pnand %p257, %p258
      %p260 = pneg %p259
      // Predicated region
      $region37: #{tpu_custom_call.1} parent=5 // pred_check
        _
      $region38: #{tpu_custom_call.1} parent=5 // pred_check_branch
        %262 = sbr.rel (%p259) target = $region40
      $region39: #{tpu_custom_call.1} parent=5 // pred_region
        %s263 = ssub.s32 %s20, 1
        %s264 = sand.u32 %s33, 1
        %s265 = scalar_lea.sflag [#allocation3], %s264
        %s266 = sand.u32 %s33, 1
        %s267 = smul.addr %s266, 32
        %s268 = scalar_lea.vmem [#allocation2], %s267
        // Predicated region
        $region41: #{tpu_custom_call.1} parent=39 // pred_check
          %p269 = pneg %p46
        $region42: #{tpu_custom_call.1} parent=39 // pred_check_branch
          %271 = sbr.rel (%p269) target = $region44
        $region43: #{tpu_custom_call.1} parent=39 // pred_region
          %273 = dma.done %s265, 512
        $region44: #{tpu_custom_call.1} parent=39 // pred_fallthru
          _
        // Predicated region
        $region45: #{tpu_custom_call.1} parent=39 // pred_check
          %p274 = pneg %p67
        $region46: #{tpu_custom_call.1} parent=39 // pred_check_branch
          %276 = sbr.rel (%p274) target = $region48
        $region47: #{tpu_custom_call.1} parent=39 // pred_region
          %278 = dma.done [#allocation6], 256
        $region48: #{tpu_custom_call.1} parent=39 // pred_fallthru
          _
        // Predicated region
        $region49: #{tpu_custom_call.1} parent=39 // pred_check
          %p279 = pneg %p109
        $region50: #{tpu_custom_call.1} parent=39 // pred_check_branch
          %281 = sbr.rel (%p279) target = $region52
        $region51: #{tpu_custom_call.1} parent=39 // pred_region
          %283 = dma.done [#allocation6], 256
        $region52: #{tpu_custom_call.1} parent=39 // pred_fallthru
          _
        %s284 = sand.u32 %s33, 1
        %s285 = scalar_lea.sflag [#allocation3], %s284
        %s286 = sand.u32 %s33, 1
        %s287 = smul.addr %s286, 32
        %s288 = scalar_lea.vmem [#allocation2], %s287
        %p289 = pneg %p46
        %p290 = pneg %p43
        %p291 = pneg %p67
        %p292 = pneg %p64
        %p293 = pneg %p88
        %p294 = pneg %p85
        %p295 = pneg %p109
        %p296 = pneg %p106
        %p297 = pneg %p130
        %p298 = pneg %p127
        %p299 = pneg %p156
        %p300 = pneg %p153
        %s301 = sand.u32 %s143, 1
        %s302 = scalar_lea.sflag [#allocation4], %s301
        %s303 = sand.u32 %s143, 1
        %s304 = smul.addr %s303, 8
        %s305 = scalar_lea.vmem [#allocation8], %s304
        %p306 = pneg %p182
        %p307 = pneg %p179
        %p308 = scmp.lt.s32.totalorder %s25, 2
        %s309 = scalar_select %p308, %s25, 2
        %s310 = smul.addr %s309, 8
        %s311 = scalar_lea.vmem %s6, %s310
        %s312 = smul.u32 8, %s25
        %p313 = scmp.lt.s32.totalorder %s25, 2
        %s314 = scalar_select %p313, %s25, 2
        %s315 = smul.addr %s314, 8
        %s316 = scalar_lea.vmem %s6, %s315
        %v318 = vld [vmem:[%s268] sm:$0xf]
        %v319 = vld [vmem:[%s268 + $0x4] sm:$0xf]
        %v320 = vld [vmem:[%s268 + $0x8] sm:$0xf]
        %v321 = vld [vmem:[%s268 + $0xc] sm:$0xf]
        %v322 = vld [vmem:[%s268 + $0x10] sm:$0xf]
        %v323 = vld [vmem:[%s268 + $0x14] sm:$0xf]
        %v324 = vld [vmem:[%s268 + $0x18] sm:$0xf]
        %v325 = vld [vmem:[%s268 + $0x1c] sm:$0xf]
        %v326 = vunpack.c.l.bf16 %v318
        %v327 = vunpack.c.l.bf16 %v319
        %v328 = vunpack.c.l.bf16 %v320
        %v329 = vunpack.c.l.bf16 %v321
        %v330 = vunpack.c.l.bf16 %v322
        %v331 = vunpack.c.l.bf16 %v323
        %v332 = vunpack.c.l.bf16 %v324
        %v333 = vunpack.c.l.bf16 %v325
        %vm334 = vcmask 261120
        %v335 = vsel %vm334, %v326, 0.0
        %v336 = vrot.slane %v335, 4
        %v337 = vadd.f32 %v335, %v336
        %v338 = vrot.slane %v337, 2
        %v339 = vadd.f32 %v337, %v338
        %v340 = vrot.slane %v339, 1
        %v341 = vadd.f32 %v339, %v340
        %v342 = vsel %vm334, %v327, 0.0
        %v343 = vrot.slane %v342, 4
        %v344 = vadd.f32 %v342, %v343
        %v345 = vrot.slane %v344, 2
        %v346 = vadd.f32 %v344, %v345
        %v347 = vrot.slane %v346, 1
        %v348 = vadd.f32 %v346, %v347
        %v349 = vsel %vm334, %v328, 0.0
        %v350 = vrot.slane %v349, 4
        %v351 = vadd.f32 %v349, %v350
        %v352 = vrot.slane %v351, 2
        %v353 = vadd.f32 %v351, %v352
        %v354 = vrot.slane %v353, 1
        %v355 = vadd.f32 %v353, %v354
        %v356 = vsel %vm334, %v329, 0.0
        %v357 = vrot.slane %v356, 4
        %v358 = vadd.f32 %v356, %v357
        %v359 = vrot.slane %v358, 2
        %v360 = vadd.f32 %v358, %v359
        %v361 = vrot.slane %v360, 1
        %v362 = vadd.f32 %v360, %v361
        %v363 = vsel %vm334, %v330, 0.0
        %v364 = vrot.slane %v363, 4
        %v365 = vadd.f32 %v363, %v364
        %v366 = vrot.slane %v365, 2
        %v367 = vadd.f32 %v365, %v366
        %v368 = vrot.slane %v367, 1
        %v369 = vadd.f32 %v367, %v368
        %v370 = vsel %vm334, %v331, 0.0
        %v371 = vrot.slane %v370, 4
        %v372 = vadd.f32 %v370, %v371
        %v373 = vrot.slane %v372, 2
        %v374 = vadd.f32 %v372, %v373
        %v375 = vrot.slane %v374, 1
        %v376 = vadd.f32 %v374, %v375
        %v377 = vsel %vm334, %v332, 0.0
        %v378 = vrot.slane %v377, 4
        %v379 = vadd.f32 %v377, %v378
        %v380 = vrot.slane %v379, 2
        %v381 = vadd.f32 %v379, %v380
        %v382 = vrot.slane %v381, 1
        %v383 = vadd.f32 %v381, %v382
        %v384 = vsel %vm334, %v333, 0.0
        %v385 = vrot.slane %v384, 4
        %v386 = vadd.f32 %v384, %v385
        %v387 = vrot.slane %v386, 2
        %v388 = vadd.f32 %v386, %v387
        %v389 = vrot.slane %v388, 1
        %v390 = vadd.f32 %v388, %v389
        %v391 = vrcp.pop 8.0
        %v392 = vmul.f32 8.0, %v391
        %v393 = vsub.f32 1.0, %v392
        %v394 = vmul.f32 %v391, %v393
        %v395 = vadd.f32 %v391, %v394
        %vm396 = vweird.f32 %v391
        %v397 = vsel %vm396, %v391, %v395
        %v398 = vmul.f32 %v341, %v397
        %v399 = vmul.f32 %v348, %v397
        %v400 = vmul.f32 %v355, %v397
        %v401 = vmul.f32 %v362, %v397
        %v402 = vmul.f32 %v369, %v397
        %v403 = vmul.f32 %v376, %v397
        %v404 = vmul.f32 %v383, %v397
        %v405 = vmul.f32 %v390, %v397
        %v406 = vpack.c.bf16 %v398, %v398
        %v407 = vpack.c.bf16 %v399, %v399
        %v408 = vpack.c.bf16 %v400, %v400
        %v409 = vpack.c.bf16 %v401, %v401
        %v410 = vpack.c.bf16 %v402, %v402
        %v411 = vpack.c.bf16 %v403, %v403
        %v412 = vpack.c.bf16 %v404, %v404
        %v413 = vpack.c.bf16 %v405, %v405
        %v414 = vld [vmem:[#allocation5] sm:$0xf]
        %v415 = vld [vmem:[#allocation5 + $0x4] sm:$0xf]
        %v416 = vld [vmem:[#allocation5 + $0x8] sm:$0xf]
        %v417 = vld [vmem:[#allocation5 + $0xc] sm:$0xf]
        %v418 = vld [vmem:[%s2] sm:$0x1]
        %v420 = vperm.slane %v418, 0
        %v430 = vunpack.c.l.b16 %v406
        %v431 = vunpack.c.l.b16 %v407
        %v432 = vunpack.c.l.b16 %v408
        %v433 = vunpack.c.l.b16 %v409
        %v434 = vunpack.c.l.b16 %v410
        %v435 = vunpack.c.l.b16 %v411
        %v436 = vunpack.c.l.b16 %v412
        %v437 = vunpack.c.l.b16 %v413
        %vm438 = vcmask 1041409
        %v439 = vsel %vm438, %v431, %v430
        %vm440 = vcmask 1042434
        %v441 = vsel %vm440, %v432, %v439
        %vm442 = vcmask 1043459
        %v443 = vsel %vm442, %v433, %v441
        %vm444 = vcmask 1044484
        %v445 = vsel %vm444, %v434, %v443
        %vm446 = vcmask 1045509
        %v447 = vsel %vm446, %v435, %v445
        %vm448 = vcmask 1046534
        %v449 = vsel %vm448, %v436, %v447
        %vm450 = vcmask 1047559
        %v451 = vsel %vm450, %v437, %v449
        %v452 = vpack.c.b16 %v451, %v451
        %v457 = vunpack.c.l.b16 %v414
        %v458 = vunpack.c.l.b16 %v415
        %v459 = vunpack.c.l.b16 %v416
        %v460 = vunpack.c.l.b16 %v417
        %v461 = vpack.c.b16 %v458, %v457
        %v462 = vpack.c.b16 %v460, %v459
        %v466 = vsel %vm334, %v452, 0
        %468 = vmatpush.bf16.msra.mxu0 0
        %469 = vmatpush.bf16.msra.mxu0 0
        %470 = vmatpush.bf16.msra.mxu0 0
        %471 = vmatpush.bf16.msra.mxu0 0
        %472 = vmatpush.bf16.msra.mxu0 0
        %473 = vmatpush.bf16.msra.mxu0 0
        %474 = vmatpush.bf16.msra.mxu0 %v462
        %475 = vmatpush.bf16.msra.mxu0 %v461
        %476 = vmatmul.bf16.gmra.mxu0 %v466
        %v477 = vpop.f32.mrf.mxu0
        %v478 = vadd.f32 %v420, %v477
        %v479 = vpop.f32.mrf.mxu0
        %480 = vdwg.mxu0
        %v481 = vpack.c.bf16 %v478, %v478
        %v482 = vld [vmem:[#allocation7] sm:$0xf]
        %v483 = vld [vmem:[#allocation7 + $0x4] sm:$0xf]
        %v484 = vld [vmem:[#allocation7 + $0x8] sm:$0xf]
        %v485 = vld [vmem:[#allocation7 + $0xc] sm:$0xf]
        %v490 = vunpack.c.l.b16 %v482
        %v491 = vunpack.c.l.b16 %v483
        %v492 = vunpack.c.l.b16 %v484
        %v493 = vunpack.c.l.b16 %v485
        %v494 = vpack.c.b16 %v491, %v490
        %v495 = vpack.c.b16 %v493, %v492
        %v499 = vsel %vm334, %v481, 0
        %501 = vmatpush.bf16.msra.mxu0 0
        %502 = vmatpush.bf16.msra.mxu0 0
        %503 = vmatpush.bf16.msra.mxu0 0
        %504 = vmatpush.bf16.msra.mxu0 0
        %505 = vmatpush.bf16.msra.mxu0 0
        %506 = vmatpush.bf16.msra.mxu0 0
        %507 = vmatpush.bf16.msra.mxu0 %v495
        %508 = vmatpush.bf16.msra.mxu0 %v494
        %509 = vmatmul.bf16.gmra.mxu0 %v499
        %v510 = vpop.f32.mrf.mxu0
        %v511 = vadd.f32 0.0, %v510
        %v512 = vpop.f32.mrf.mxu0
        %513 = vdwg.mxu0
        %v514 = vld [vmem:[%s4] sm:$0x1]
        %v516 = vperm.slane %v514, 0
        %v518 = vmul.f32 %v478, %v516
        %v519 = vsel %vm334, %v518, 0.0
        %520 = vadd.xlane.f32.xlu0 %v519
        %v521 = vpop.xlane.xlu0 %520
        %v523 = vrot.slane %v511, 1
        %v524 = vrot.slane %v511, 2
        %v525 = vrot.slane %v511, 3
        %v526 = vrot.slane %v511, 4
        %v527 = vrot.slane %v511, 5
        %v528 = vrot.slane %v511, 6
        %v529 = vrot.slane %v511, 7
        %v537 = vpack.c.bf16 %v511, %v511
        %v538 = vpack.c.bf16 %v523, %v523
        %v539 = vpack.c.bf16 %v524, %v524
        %v540 = vpack.c.bf16 %v525, %v525
        %v541 = vpack.c.bf16 %v526, %v526
        %v542 = vpack.c.bf16 %v527, %v527
        %v543 = vpack.c.bf16 %v528, %v528
        %v544 = vpack.c.bf16 %v529, %v529
        %v546 = vperm.slane %v521, 0
        %v547 = vperm.slane %v521, 1
        %v548 = vperm.slane %v521, 2
        %v549 = vperm.slane %v521, 3
        %v550 = vperm.slane %v521, 4
        %v551 = vperm.slane %v521, 5
        %v552 = vperm.slane %v521, 6
        %v553 = vperm.slane %v521, 7
        %v563 = vsel %vm334, %v537, 0
        %v566 = vsel %vm334, %v318, 0
        %568 = vmatpush.bf16.xpose.msra.mxu0 0
        %569 = vmatpush.bf16.xpose.msra.mxu0 0
        %570 = vmatpush.bf16.xpose.msra.mxu0 0
        %571 = vmatpush.bf16.xpose.msra.mxu0 0
        %572 = vmatpush.bf16.xpose.msra.mxu0 0
        %573 = vmatpush.bf16.xpose.msra.mxu0 0
        %574 = vmatpush.bf16.xpose.msra.mxu0 0
        %575 = vmatpush.bf16.xpose.msra.mxu0 %v566
        %576 = vmatmul.bf16.gmra.mxu0 %v563
        %v577 = vpop.f32.mrf.mxu0
        %v578 = vadd.f32 %v546, %v577
        %v579 = vpop.f32.mrf.mxu0
        %580 = vdwg.mxu0
        %v582 = vsel %vm334, %v538, 0
        %v585 = vsel %vm334, %v319, 0
        %587 = vmatpush.bf16.xpose.msra.mxu0 0
        %588 = vmatpush.bf16.xpose.msra.mxu0 0
        %589 = vmatpush.bf16.xpose.msra.mxu0 0
        %590 = vmatpush.bf16.xpose.msra.mxu0 0
        %591 = vmatpush.bf16.xpose.msra.mxu0 0
        %592 = vmatpush.bf16.xpose.msra.mxu0 0
        %593 = vmatpush.bf16.xpose.msra.mxu0 0
        %594 = vmatpush.bf16.xpose.msra.mxu0 %v585
        %595 = vmatmul.bf16.gmra.mxu0 %v582
        %v596 = vpop.f32.mrf.mxu0
        %v597 = vadd.f32 %v547, %v596
        %v598 = vpop.f32.mrf.mxu0
        %599 = vdwg.mxu0
        %v601 = vsel %vm334, %v539, 0
        %v604 = vsel %vm334, %v320, 0
        %606 = vmatpush.bf16.xpose.msra.mxu0 0
        %607 = vmatpush.bf16.xpose.msra.mxu0 0
        %608 = vmatpush.bf16.xpose.msra.mxu0 0
        %609 = vmatpush.bf16.xpose.msra.mxu0 0
        %610 = vmatpush.bf16.xpose.msra.mxu0 0
        %611 = vmatpush.bf16.xpose.msra.mxu0 0
        %612 = vmatpush.bf16.xpose.msra.mxu0 0
        %613 = vmatpush.bf16.xpose.msra.mxu0 %v604
        %614 = vmatmul.bf16.gmra.mxu0 %v601
        %v615 = vpop.f32.mrf.mxu0
        %v616 = vadd.f32 %v548, %v615
        %v617 = vpop.f32.mrf.mxu0
        %618 = vdwg.mxu0
        %v620 = vsel %vm334, %v540, 0
        %v623 = vsel %vm334, %v321, 0
        %625 = vmatpush.bf16.xpose.msra.mxu0 0
        %626 = vmatpush.bf16.xpose.msra.mxu0 0
        %627 = vmatpush.bf16.xpose.msra.mxu0 0
        %628 = vmatpush.bf16.xpose.msra.mxu0 0
        %629 = vmatpush.bf16.xpose.msra.mxu0 0
        %630 = vmatpush.bf16.xpose.msra.mxu0 0
        %631 = vmatpush.bf16.xpose.msra.mxu0 0
        %632 = vmatpush.bf16.xpose.msra.mxu0 %v623
        %633 = vmatmul.bf16.gmra.mxu0 %v620
        %v634 = vpop.f32.mrf.mxu0
        %v635 = vadd.f32 %v549, %v634
        %v636 = vpop.f32.mrf.mxu0
        %637 = vdwg.mxu0
        %v639 = vsel %vm334, %v541, 0
        %v642 = vsel %vm334, %v322, 0
        %644 = vmatpush.bf16.xpose.msra.mxu0 0
        %645 = vmatpush.bf16.xpose.msra.mxu0 0
        %646 = vmatpush.bf16.xpose.msra.mxu0 0
        %647 = vmatpush.bf16.xpose.msra.mxu0 0
        %648 = vmatpush.bf16.xpose.msra.mxu0 0
        %649 = vmatpush.bf16.xpose.msra.mxu0 0
        %650 = vmatpush.bf16.xpose.msra.mxu0 0
        %651 = vmatpush.bf16.xpose.msra.mxu0 %v642
        %652 = vmatmul.bf16.gmra.mxu0 %v639
        %v653 = vpop.f32.mrf.mxu0
        %v654 = vadd.f32 %v550, %v653
        %v655 = vpop.f32.mrf.mxu0
        %656 = vdwg.mxu0
        %v658 = vsel %vm334, %v542, 0
        %v661 = vsel %vm334, %v323, 0
        %663 = vmatpush.bf16.xpose.msra.mxu0 0
        %664 = vmatpush.bf16.xpose.msra.mxu0 0
        %665 = vmatpush.bf16.xpose.msra.mxu0 0
        %666 = vmatpush.bf16.xpose.msra.mxu0 0
        %667 = vmatpush.bf16.xpose.msra.mxu0 0
        %668 = vmatpush.bf16.xpose.msra.mxu0 0
        %669 = vmatpush.bf16.xpose.msra.mxu0 0
        %670 = vmatpush.bf16.xpose.msra.mxu0 %v661
        %671 = vmatmul.bf16.gmra.mxu0 %v658
        %v672 = vpop.f32.mrf.mxu0
        %v673 = vadd.f32 %v551, %v672
        %v674 = vpop.f32.mrf.mxu0
        %675 = vdwg.mxu0
        %v677 = vsel %vm334, %v543, 0
        %v680 = vsel %vm334, %v324, 0
        %682 = vmatpush.bf16.xpose.msra.mxu0 0
        %683 = vmatpush.bf16.xpose.msra.mxu0 0
        %684 = vmatpush.bf16.xpose.msra.mxu0 0
        %685 = vmatpush.bf16.xpose.msra.mxu0 0
        %686 = vmatpush.bf16.xpose.msra.mxu0 0
        %687 = vmatpush.bf16.xpose.msra.mxu0 0
        %688 = vmatpush.bf16.xpose.msra.mxu0 0
        %689 = vmatpush.bf16.xpose.msra.mxu0 %v680
        %690 = vmatmul.bf16.gmra.mxu0 %v677
        %v691 = vpop.f32.mrf.mxu0
        %v692 = vadd.f32 %v552, %v691
        %v693 = vpop.f32.mrf.mxu0
        %694 = vdwg.mxu0
        %v696 = vsel %vm334, %v544, 0
        %v699 = vsel %vm334, %v325, 0
        %701 = vmatpush.bf16.xpose.msra.mxu0 0
        %702 = vmatpush.bf16.xpose.msra.mxu0 0
        %703 = vmatpush.bf16.xpose.msra.mxu0 0
        %704 = vmatpush.bf16.xpose.msra.mxu0 0
        %705 = vmatpush.bf16.xpose.msra.mxu0 0
        %706 = vmatpush.bf16.xpose.msra.mxu0 0
        %707 = vmatpush.bf16.xpose.msra.mxu0 0
        %708 = vmatpush.bf16.xpose.msra.mxu0 %v699
        %709 = vmatmul.bf16.gmra.mxu0 %v696
        %v710 = vpop.f32.mrf.mxu0
        %v711 = vadd.f32 %v553, %v710
        %v712 = vpop.f32.mrf.mxu0
        %713 = vdwg.mxu0
        %v714 = vmul.f32 %v578, 0.17677669
        %v715 = vmul.f32 %v597, 0.17677669
        %v716 = vmul.f32 %v616, 0.17677669
        %v717 = vmul.f32 %v635, 0.17677669
        %v718 = vmul.f32 %v654, 0.17677669
        %v719 = vmul.f32 %v673, 0.17677669
        %v720 = vmul.f32 %v692, 0.17677669
        %v721 = vmul.f32 %v711, 0.17677669
        %v722 = vxor.u32 %v714, 2147483648
        %v723 = vxor.u32 %v715, 2147483648
        %v724 = vxor.u32 %v716, 2147483648
        %v725 = vxor.u32 %v717, 2147483648
        %v726 = vxor.u32 %v718, 2147483648
        %v727 = vxor.u32 %v719, 2147483648
        %v728 = vxor.u32 %v720, 2147483648
        %v729 = vxor.u32 %v721, 2147483648
        %v730 = vmul.f32 %v722, 1.442695
        %v731 = vpow.pop %v730
        %v732 = vmul.f32 %v723, 1.442695
        %v733 = vpow.pop %v732
        %v734 = vmul.f32 %v724, 1.442695
        %v735 = vpow.pop %v734
        %v736 = vmul.f32 %v725, 1.442695
        %v737 = vpow.pop %v736
        %v738 = vmul.f32 %v726, 1.442695
        %v739 = vpow.pop %v738
        %v740 = vmul.f32 %v727, 1.442695
        %v741 = vpow.pop %v740
        %v742 = vmul.f32 %v728, 1.442695
        %v743 = vpow.pop %v742
        %v744 = vmul.f32 %v729, 1.442695
        %v745 = vpow.pop %v744
        %v746 = vadd.f32 %v731, 1.0
        %v747 = vadd.f32 %v733, 1.0
        %v748 = vadd.f32 %v735, 1.0
        %v749 = vadd.f32 %v737, 1.0
        %v750 = vadd.f32 %v739, 1.0
        %v751 = vadd.f32 %v741, 1.0
        %v752 = vadd.f32 %v743, 1.0
        %v753 = vadd.f32 %v745, 1.0
        %v754 = vrcp.pop %v746
        %v755 = vmul.f32 %v746, %v754
        %v756 = vsub.f32 1.0, %v755
        %v757 = vmul.f32 %v754, %v756
        %v758 = vadd.f32 %v754, %v757
        %vm759 = vweird.f32 %v746
        %vm760 = vweird.f32 %v754
        %vm761 = vmor %vm759, %vm760
        %v762 = vsel %vm761, %v754, %v758
        %v763 = vand.u32 2147483647, %v746
        %vm764 = vcmp.eq.f32.partialorder %v763, 8.507059e+37
        %v765 = vand.u32 %v746, 2147483648
        %v766 = vor.u32 1.1754944e-38, %v765
        %v767 = vsel %vm764, %v766, %v762
        %v768 = vmul.f32 1.0, %v767
        %v769 = vrcp.pop %v747
        %v770 = vmul.f32 %v747, %v769
        %v771 = vsub.f32 1.0, %v770
        %v772 = vmul.f32 %v769, %v771
        %v773 = vadd.f32 %v769, %v772
        %vm774 = vweird.f32 %v747
        %vm775 = vweird.f32 %v769
        %vm776 = vmor %vm774, %vm775
        %v777 = vsel %vm776, %v769, %v773
        %v778 = vand.u32 2147483647, %v747
        %vm779 = vcmp.eq.f32.partialorder %v778, 8.507059e+37
        %v780 = vand.u32 %v747, 2147483648
        %v781 = vor.u32 1.1754944e-38, %v780
        %v782 = vsel %vm779, %v781, %v777
        %v783 = vmul.f32 1.0, %v782
        %v784 = vrcp.pop %v748
        %v785 = vmul.f32 %v748, %v784
        %v786 = vsub.f32 1.0, %v785
        %v787 = vmul.f32 %v784, %v786
        %v788 = vadd.f32 %v784, %v787
        %vm789 = vweird.f32 %v748
        %vm790 = vweird.f32 %v784
        %vm791 = vmor %vm789, %vm790
        %v792 = vsel %vm791, %v784, %v788
        %v793 = vand.u32 2147483647, %v748
        %vm794 = vcmp.eq.f32.partialorder %v793, 8.507059e+37
        %v795 = vand.u32 %v748, 2147483648
        %v796 = vor.u32 1.1754944e-38, %v795
        %v797 = vsel %vm794, %v796, %v792
        %v798 = vmul.f32 1.0, %v797
        %v799 = vrcp.pop %v749
        %v800 = vmul.f32 %v749, %v799
        %v801 = vsub.f32 1.0, %v800
        %v802 = vmul.f32 %v799, %v801
        %v803 = vadd.f32 %v799, %v802
        %vm804 = vweird.f32 %v749
        %vm805 = vweird.f32 %v799
        %vm806 = vmor %vm804, %vm805
        %v807 = vsel %vm806, %v799, %v803
        %v808 = vand.u32 2147483647, %v749
        %vm809 = vcmp.eq.f32.partialorder %v808, 8.507059e+37
        %v810 = vand.u32 %v749, 2147483648
        %v811 = vor.u32 1.1754944e-38, %v810
        %v812 = vsel %vm809, %v811, %v807
        %v813 = vmul.f32 1.0, %v812
        %v814 = vrcp.pop %v750
        %v815 = vmul.f32 %v750, %v814
        %v816 = vsub.f32 1.0, %v815
        %v817 = vmul.f32 %v814, %v816
        %v818 = vadd.f32 %v814, %v817
        %vm819 = vweird.f32 %v750
        %vm820 = vweird.f32 %v814
        %vm821 = vmor %vm819, %vm820
        %v822 = vsel %vm821, %v814, %v818
        %v823 = vand.u32 2147483647, %v750
        %vm824 = vcmp.eq.f32.partialorder %v823, 8.507059e+37
        %v825 = vand.u32 %v750, 2147483648
        %v826 = vor.u32 1.1754944e-38, %v825
        %v827 = vsel %vm824, %v826, %v822
        %v828 = vmul.f32 1.0, %v827
        %v829 = vrcp.pop %v751
        %v830 = vmul.f32 %v751, %v829
        %v831 = vsub.f32 1.0, %v830
        %v832 = vmul.f32 %v829, %v831
        %v833 = vadd.f32 %v829, %v832
        %vm834 = vweird.f32 %v751
        %vm835 = vweird.f32 %v829
        %vm836 = vmor %vm834, %vm835
        %v837 = vsel %vm836, %v829, %v833
        %v838 = vand.u32 2147483647, %v751
        %vm839 = vcmp.eq.f32.partialorder %v838, 8.507059e+37
        %v840 = vand.u32 %v751, 2147483648
        %v841 = vor.u32 1.1754944e-38, %v840
        %v842 = vsel %vm839, %v841, %v837
        %v843 = vmul.f32 1.0, %v842
        %v844 = vrcp.pop %v752
        %v845 = vmul.f32 %v752, %v844
        %v846 = vsub.f32 1.0, %v845
        %v847 = vmul.f32 %v844, %v846
        %v848 = vadd.f32 %v844, %v847
        %vm849 = vweird.f32 %v752
        %vm850 = vweird.f32 %v844
        %vm851 = vmor %vm849, %vm850
        %v852 = vsel %vm851, %v844, %v848
        %v853 = vand.u32 2147483647, %v752
        %vm854 = vcmp.eq.f32.partialorder %v853, 8.507059e+37
        %v855 = vand.u32 %v752, 2147483648
        %v856 = vor.u32 1.1754944e-38, %v855
        %v857 = vsel %vm854, %v856, %v852
        %v858 = vmul.f32 1.0, %v857
        %v859 = vrcp.pop %v753
        %v860 = vmul.f32 %v753, %v859
        %v861 = vsub.f32 1.0, %v860
        %v862 = vmul.f32 %v859, %v861
        %v863 = vadd.f32 %v859, %v862
        %vm864 = vweird.f32 %v753
        %vm865 = vweird.f32 %v859
        %vm866 = vmor %vm864, %vm865
        %v867 = vsel %vm866, %v859, %v863
        %v868 = vand.u32 2147483647, %v753
        %vm869 = vcmp.eq.f32.partialorder %v868, 8.507059e+37
        %v870 = vand.u32 %v753, 2147483648
        %v871 = vor.u32 1.1754944e-38, %v870
        %v872 = vsel %vm869, %v871, %v867
        %v873 = vmul.f32 1.0, %v872
        %v874 = vpack.c.bf16 %v768, %v768
        %v875 = vpack.c.bf16 %v783, %v783
        %v876 = vpack.c.bf16 %v798, %v798
        %v877 = vpack.c.bf16 %v813, %v813
        %v878 = vpack.c.bf16 %v828, %v828
        %v879 = vpack.c.bf16 %v843, %v843
        %v880 = vpack.c.bf16 %v858, %v858
        %v881 = vpack.c.bf16 %v873, %v873
        %vm882 = vcmask 64512
        %v884 = vsel %vm882, %v874, 0
        %vm886 = vcmask 1043456
        %v887 = vsel %vm886, %v318, 0
        %889 = vmatpush.bf16.msra.mxu0 0
        %890 = vmatpush.bf16.msra.mxu0 0
        %891 = vmatpush.bf16.msra.mxu0 0
        %892 = vmatpush.bf16.msra.mxu0 0
        %893 = vmatpush.bf16.msra.mxu0 0
        %894 = vmatpush.bf16.msra.mxu0 0
        %895 = vmatpush.bf16.msra.mxu0 0
        %896 = vmatpush.bf16.msra.mxu0 %v887
        %897 = vmatmul.bf16.gmra.mxu0 %v884
        %v898 = vpop.f32.mrf.mxu0
        %v899 = vadd.f32 0.0, %v898
        %v900 = vpop.f32.mrf.mxu0
        %901 = vdwg.mxu0
        %v903 = vsel %vm882, %v875, 0
        %v905 = vsel %vm886, %v319, 0
        %907 = vmatpush.bf16.msra.mxu0 0
        %908 = vmatpush.bf16.msra.mxu0 0
        %909 = vmatpush.bf16.msra.mxu0 0
        %910 = vmatpush.bf16.msra.mxu0 0
        %911 = vmatpush.bf16.msra.mxu0 0
        %912 = vmatpush.bf16.msra.mxu0 0
        %913 = vmatpush.bf16.msra.mxu0 0
        %914 = vmatpush.bf16.msra.mxu0 %v905
        %915 = vmatmul.bf16.gmra.mxu0 %v903
        %v916 = vpop.f32.mrf.mxu0
        %v917 = vadd.f32 0.0, %v916
        %v918 = vpop.f32.mrf.mxu0
        %919 = vdwg.mxu0
        %v921 = vsel %vm882, %v876, 0
        %v923 = vsel %vm886, %v320, 0
        %925 = vmatpush.bf16.msra.mxu0 0
        %926 = vmatpush.bf16.msra.mxu0 0
        %927 = vmatpush.bf16.msra.mxu0 0
        %928 = vmatpush.bf16.msra.mxu0 0
        %929 = vmatpush.bf16.msra.mxu0 0
        %930 = vmatpush.bf16.msra.mxu0 0
        %931 = vmatpush.bf16.msra.mxu0 0
        %932 = vmatpush.bf16.msra.mxu0 %v923
        %933 = vmatmul.bf16.gmra.mxu0 %v921
        %v934 = vpop.f32.mrf.mxu0
        %v935 = vadd.f32 0.0, %v934
        %v936 = vpop.f32.mrf.mxu0
        %937 = vdwg.mxu0
        %v939 = vsel %vm882, %v877, 0
        %v941 = vsel %vm886, %v321, 0
        %943 = vmatpush.bf16.msra.mxu0 0
        %944 = vmatpush.bf16.msra.mxu0 0
        %945 = vmatpush.bf16.msra.mxu0 0
        %946 = vmatpush.bf16.msra.mxu0 0
        %947 = vmatpush.bf16.msra.mxu0 0
        %948 = vmatpush.bf16.msra.mxu0 0
        %949 = vmatpush.bf16.msra.mxu0 0
        %950 = vmatpush.bf16.msra.mxu0 %v941
        %951 = vmatmul.bf16.gmra.mxu0 %v939
        %v952 = vpop.f32.mrf.mxu0
        %v953 = vadd.f32 0.0, %v952
        %v954 = vpop.f32.mrf.mxu0
        %955 = vdwg.mxu0
        %v957 = vsel %vm882, %v878, 0
        %v959 = vsel %vm886, %v322, 0
        %961 = vmatpush.bf16.msra.mxu0 0
        %962 = vmatpush.bf16.msra.mxu0 0
        %963 = vmatpush.bf16.msra.mxu0 0
        %964 = vmatpush.bf16.msra.mxu0 0
        %965 = vmatpush.bf16.msra.mxu0 0
        %966 = vmatpush.bf16.msra.mxu0 0
        %967 = vmatpush.bf16.msra.mxu0 0
        %968 = vmatpush.bf16.msra.mxu0 %v959
        %969 = vmatmul.bf16.gmra.mxu0 %v957
        %v970 = vpop.f32.mrf.mxu0
        %v971 = vadd.f32 0.0, %v970
        %v972 = vpop.f32.mrf.mxu0
        %973 = vdwg.mxu0
        %v975 = vsel %vm882, %v879, 0
        %v977 = vsel %vm886, %v323, 0
        %979 = vmatpush.bf16.msra.mxu0 0
        %980 = vmatpush.bf16.msra.mxu0 0
        %981 = vmatpush.bf16.msra.mxu0 0
        %982 = vmatpush.bf16.msra.mxu0 0
        %983 = vmatpush.bf16.msra.mxu0 0
        %984 = vmatpush.bf16.msra.mxu0 0
        %985 = vmatpush.bf16.msra.mxu0 0
        %986 = vmatpush.bf16.msra.mxu0 %v977
        %987 = vmatmul.bf16.gmra.mxu0 %v975
        %v988 = vpop.f32.mrf.mxu0
        %v989 = vadd.f32 0.0, %v988
        %v990 = vpop.f32.mrf.mxu0
        %991 = vdwg.mxu0
        %v993 = vsel %vm882, %v880, 0
        %v995 = vsel %vm886, %v324, 0
        %997 = vmatpush.bf16.msra.mxu0 0
        %998 = vmatpush.bf16.msra.mxu0 0
        %999 = vmatpush.bf16.msra.mxu0 0
        %1000 = vmatpush.bf16.msra.mxu0 0
        %1001 = vmatpush.bf16.msra.mxu0 0
        %1002 = vmatpush.bf16.msra.mxu0 0
        %1003 = vmatpush.bf16.msra.mxu0 0
        %1004 = vmatpush.bf16.msra.mxu0 %v995
        %1005 = vmatmul.bf16.gmra.mxu0 %v993
        %v1006 = vpop.f32.mrf.mxu0
        %v1007 = vadd.f32 0.0, %v1006
        %v1008 = vpop.f32.mrf.mxu0
        %1009 = vdwg.mxu0
        %v1011 = vsel %vm882, %v881, 0
        %v1013 = vsel %vm886, %v325, 0
        %1015 = vmatpush.bf16.msra.mxu0 0
        %1016 = vmatpush.bf16.msra.mxu0 0
        %1017 = vmatpush.bf16.msra.mxu0 0
        %1018 = vmatpush.bf16.msra.mxu0 0
        %1019 = vmatpush.bf16.msra.mxu0 0
        %1020 = vmatpush.bf16.msra.mxu0 0
        %1021 = vmatpush.bf16.msra.mxu0 0
        %1022 = vmatpush.bf16.msra.mxu0 %v1013
        %1023 = vmatmul.bf16.gmra.mxu0 %v1011
        %v1024 = vpop.f32.mrf.mxu0
        %v1025 = vadd.f32 0.0, %v1024
        %v1026 = vpop.f32.mrf.mxu0
        %1027 = vdwg.mxu0
        %v1028 = vmul.f32 %v899, 0.125
        %v1029 = vmul.f32 %v917, 0.125
        %v1030 = vmul.f32 %v935, 0.125
        %v1031 = vmul.f32 %v953, 0.125
        %v1032 = vmul.f32 %v971, 0.125
        %v1033 = vmul.f32 %v989, 0.125
        %v1034 = vmul.f32 %v1007, 0.125
        %v1035 = vmul.f32 %v1025, 0.125
        %v1044 = vrot.slane %v1029, 7
        %v1045 = vsel %vm438, %v1044, %v1028
        %v1046 = vrot.slane %v1030, 6
        %v1047 = vsel %vm440, %v1046, %v1045
        %v1048 = vrot.slane %v1031, 5
        %v1049 = vsel %vm442, %v1048, %v1047
        %v1050 = vrot.slane %v1032, 4
        %v1051 = vsel %vm444, %v1050, %v1049
        %v1052 = vrot.slane %v1033, 3
        %v1053 = vsel %vm446, %v1052, %v1051
        %v1054 = vrot.slane %v1034, 2
        %v1055 = vsel %vm448, %v1054, %v1053
        %v1056 = vrot.slane %v1035, 1
        %v1057 = vsel %vm450, %v1056, %v1055
        %1059 = vst.msk [vmem:[%s305] sm:$0xff] %vm334, %v1057
        %v1068 = vrot.slane %v783, 7
        %v1069 = vsel %vm438, %v1068, %v768
        %v1070 = vrot.slane %v798, 6
        %v1071 = vsel %vm440, %v1070, %v1069
        %v1072 = vrot.slane %v813, 5
        %v1073 = vsel %vm442, %v1072, %v1071
        %v1074 = vrot.slane %v828, 4
        %v1075 = vsel %vm444, %v1074, %v1073
        %v1076 = vrot.slane %v843, 3
        %v1077 = vsel %vm446, %v1076, %v1075
        %v1078 = vrot.slane %v858, 2
        %v1079 = vsel %vm448, %v1078, %v1077
        %v1080 = vrot.slane %v873, 1
        %v1081 = vsel %vm450, %v1080, %v1079
        %1083 = vst.msk [vmem:[%s316] sm:$0xff] %vm882, %v1081
        %s1084 = sand.u32 %s143, 1
        %s1085 = scalar_lea.sflag [#allocation4], %s1084
        %s1086 = sand.u32 %s143, 1
        %s1087 = smul.addr %s1086, 8
        %s1088 = scalar_lea.vmem [#allocation8], %s1087
        %p1089 = scmp.lt.s32.totalorder %s25, 2
        %s1090 = scalar_select %p1089, %s25, 2
        %s1091 = smul.addr %s1090, 8
        %s1092 = scalar_lea.vmem %s6, %s1091
        // Predicated region
        $region53: #{tpu_custom_call.1} parent=39 // pred_check
          %p1093 = pneg %p153
        $region54: #{tpu_custom_call.1} parent=39 // pred_check_branch
          %1095 = sbr.rel (%p1093) target = $region56
        $region55: #{tpu_custom_call.1} parent=39 // pred_region
          %1097 = vsyncadd %s1085, 0
          %s1098 = smul.addr %s25, 8
          %s1099 = scalar_lea.hbm %s5, %s1098
          %s1101 = sshll.u32 %s1088, 4
          %s1102 = int_to_ptr.vmem [resolvable:$true] %s1101
          %s1103 = sshll.u32 %s1099, 4
          %s1104 = int_to_ptr.hbm [resolvable:$true] %s1103
          %1106 = dma.vmem_to_hbm [thread:$0]  %s1102, 128, %s1104, %s1085
        $region56: #{tpu_custom_call.1} parent=39 // pred_fallthru
          _
        // Predicated region
        $region57: #{tpu_custom_call.1} parent=39 // pred_check
          %p1107 = pneg %p179
        $region58: #{tpu_custom_call.1} parent=39 // pred_check_branch
          %1109 = sbr.rel (%p1107) target = $region60
        $region59: #{tpu_custom_call.1} parent=39 // pred_region
          _
        $region60: #{tpu_custom_call.1} parent=39 // pred_fallthru
          _
      $region40: #{tpu_custom_call.1} parent=5 // pred_fallthru
        _
      %p1110 = scmp.le.s32.totalorder 2, %s20
      // Predicated region
      $region61: #{tpu_custom_call.1} parent=5 // pred_check
        %p1111 = pneg %p1110
      $region62: #{tpu_custom_call.1} parent=5 // pred_check_branch
        %1113 = sbr.rel (%p1111) target = $region64
      $region63: #{tpu_custom_call.1} parent=5 // pred_region
        %s1114 = ssub.s32 %s20, 2
        // Predicated region
        $region65: #{tpu_custom_call.1} parent=63 // pred_check
          %p1115 = pneg %p159
        $region66: #{tpu_custom_call.1} parent=63 // pred_check_branch
          %1117 = sbr.rel (%p1115) target = $region68
        $region67: #{tpu_custom_call.1} parent=63 // pred_region
          %s1118 = sand.u32 %s144, 1
          %s1119 = scalar_lea.sflag [#allocation4], %s1118
          %s1120 = sand.u32 %s144, 1
          %s1121 = smul.addr %s1120, 8
          %s1122 = scalar_lea.vmem [#allocation8], %s1121
          %1124 = dma.done %s1119, 128
        $region68: #{tpu_custom_call.1} parent=63 // pred_fallthru
          _
        // Predicated region
        $region69: #{tpu_custom_call.1} parent=63 // pred_check
          %p1125 = pneg %p185
        $region70: #{tpu_custom_call.1} parent=63 // pred_check_branch
          %1127 = sbr.rel (%p1125) target = $region72
        $region71: #{tpu_custom_call.1} parent=63 // pred_region
          %p1128 = scmp.lt.s32.totalorder %s26, 2
          %s1129 = scalar_select %p1128, %s26, 2
          %s1130 = smul.addr %s1129, 8
          %s1131 = scalar_lea.vmem %s6, %s1130
        $region72: #{tpu_custom_call.1} parent=63 // pred_fallthru
          _
      $region64: #{tpu_custom_call.1} parent=5 // pred_fallthru
        _
    $region6: #{tpu_custom_call.1} parent=1 // loop_footer
      %s24 = sadd.s32 1, %s20
    $region7: #{tpu_custom_call.1} parent=1 // loop_footer_branch
      %19 = sbr.rel target = $region3
    $region8: #{tpu_custom_call.1} parent=1 // loop_exit
      _
    %1132 = vsyncpa [#allocation3], 1
    %s1133 = scalar_lea.sflag [#allocation3], 1
    %1134 = vsyncpa %s1133, 1
    %1135 = vsyncpa [#allocation6], 1
    %1136 = vsyncpa [#allocation4], 1
    %s1137 = scalar_lea.sflag [#allocation4], 1
    %1138 = vsyncpa %s1137, 1

</llo_original>
